<compile_context>
chip_gen: v7x
topology: tpu7x:2x2x1
jax: 0.10.0
libtpu: 0.0.40
codegen_flags: <defaults>
</compile_context>

<pallas_src>
import functools

import jax
import jax.numpy as jnp
from jax.experimental import pallas as pl
from jax.experimental.pallas import tpu as pltpu


LANE = 128
SUBLANE = 8
_TILE_ELEMS = SUBLANE * LANE  # one full f32 (8,128) vreg tile
# ~2 MiB of f32 per input block: big enough to sit near the HBM roofline,
# small enough that double-buffered inputs + temporaries fit comfortably in
# v7x's 32 MiB default scoped VMEM limit.
_TARGET_BLOCK_ELEMS = 512 * 1024
_LANE_CANDIDATES = (8192, 4096, 2048, 1024, 512, 256, 128)


def _focal_loss_elements(x, t, *, alpha, gamma, logits):
    """Per-element focal loss, computed in f32 (VPU + EUP)."""
    p = x.astype(jnp.float32)
    t = t.astype(jnp.float32)

    if logits:
        # numerically stable BCE-with-logits: max(x,0) - x*t + log1p(exp(-|x|))
        bce = jnp.maximum(p, 0.0) - p * t + jnp.log1p(jnp.exp(-jnp.abs(p)))
    else:
        # PyTorch F.binary_cross_entropy clamps log terms at -100
        log_p = jnp.maximum(jnp.log(p), -100.0)
        log_1mp = jnp.maximum(jnp.log(1.0 - p), -100.0)
        bce = -(t * log_p + (1.0 - t) * log_1mp)

    pt = jnp.exp(-bce)
    one_m_pt = 1.0 - pt

    g = float(gamma)
    if g == int(g) and 0 <= int(g) <= 4:
        # integer gamma: pure VPU multiplies, avoids exp(g*log(x)) and the
        # log(0) hazard when pt == 1.
        gi = int(g)
        if gi == 0:
            mod = jnp.ones_like(one_m_pt)
        else:
            mod = one_m_pt
            for _ in range(gi - 1):
                mod = mod * one_m_pt
    else:
        mod = one_m_pt ** g

    return (float(alpha) * mod) * bce


def _focal_reduce_kernel(x_ref, t_ref, part_ref, acc_ref, *,
                         alpha, gamma, logits):
    i = pl.program_id(1)

    @pl.when(i == 0)
    def _():
        acc_ref[...] = jnp.zeros_like(acc_ref)

    f_loss = _focal_loss_elements(x_ref[...], t_ref[...],
                                  alpha=alpha, gamma=gamma, logits=logits)
    tile_rows, lanes = f_loss.shape
    acc_rows = acc_ref.shape[0]
    if tile_rows == acc_rows:
        partial = f_loss
    else:
        # lane-wise partial sums: elementwise (VPU) adds of (8, lanes) slabs;
        # no per-step cross-lane reduction (sublane groups stay intact, so the
        # reshape is layout-preserving).
        partial = f_loss.reshape(tile_rows // acc_rows, acc_rows, lanes).sum(axis=0)
    acc_ref[...] += partial

    @pl.when(i == pl.num_programs(1) - 1)
    def _():
        part_ref[...] = acc_ref[...]


def _focal_map_kernel(x_ref, t_ref, o_ref, *, alpha, gamma, logits):
    o_ref[...] = _focal_loss_elements(
        x_ref[...], t_ref[...], alpha=alpha, gamma=gamma, logits=logits
    ).astype(o_ref.dtype)


def _plan_layout(total_n):
    """Pick (rows, lanes, pad) with rows % 8 == 0 and lanes a multiple of 128."""
    padded = pl.cdiv(total_n, _TILE_ELEMS) * _TILE_ELEMS
    for lanes in _LANE_CANDIDATES:
        if padded % (lanes * SUBLANE) == 0:
            return padded // lanes, lanes, padded - total_n
    # unreachable: padded is always a multiple of SUBLANE * LANE
    return padded // LANE, LANE, padded - total_n


def _choose_tile_rows(rows, lanes):
    if rows <= SUBLANE:
        return rows  # full-extent block on the row dim
    target = max(SUBLANE, (_TARGET_BLOCK_ELEMS // lanes) // SUBLANE * SUBLANE)
    tile = (min(rows, target) // SUBLANE) * SUBLANE
    while tile >= SUBLANE and rows % tile != 0:
        tile -= SUBLANE
    if tile < SUBLANE:
        return rows  # degenerate factorization: single full-extent block
    return tile


def focal_loss(inputs, targets, *, alpha=1.0, gamma=2.0, logits=False,
               reduce=True):
    """Pallas TPU implementation of FocalLoss.forward.

    inputs/targets: same shape (e.g. NCHW).  Returns the scalar mean if
    reduce=True, else the per-element focal loss with the input shape/dtype.
    """
    orig_shape = inputs.shape
    total_n = 1
    for d in orig_shape:
        total_n *= d

    rows, lanes, pad = _plan_layout(total_n)
    tile_rows = _choose_tile_rows(rows, lanes)
    num_blocks = rows // tile_rows

    x_flat = inputs.reshape(-1)
    t_flat = targets.reshape(-1)
    if pad:
        # Pad with values whose focal loss is exactly 0 in f32:
        #   probabilities: x=1, t=1  -> bce = 0 -> loss = 0
        #   logits:        x=200,t=1 -> bce = 0 (exp(-200) underflows) -> 0
        pad_x_val = 200.0 if logits else 1.0
        x_flat = jnp.concatenate(
            [x_flat, jnp.full((pad,), pad_x_val, dtype=inputs.dtype)])
        t_flat = jnp.concatenate(
            [t_flat, jnp.full((pad,), 1.0, dtype=targets.dtype)])
    x2 = x_flat.reshape(rows, lanes)
    t2 = t_flat.reshape(rows, lanes)

    if reduce:
        # Split the row-blocks into two chunks on a 'parallel' axis so v7x can
        # shard them across its 2 TensorCores (harmless no-op on v5e/v6e).
        n_par = 2 if (num_blocks % 2 == 0 and num_blocks >= 2) else 1
        n_seq = num_blocks // n_par
        acc_rows = SUBLANE if tile_rows % SUBLANE == 0 else tile_rows

        kernel = functools.partial(
            _focal_reduce_kernel, alpha=float(alpha), gamma=float(gamma),
            logits=bool(logits))
        partials = pl.pallas_call(
            kernel,
            out_shape=jax.ShapeDtypeStruct((n_par, acc_rows, lanes),
                                           jnp.float32),
            grid_spec=pltpu.PrefetchScalarGridSpec(
                num_scalar_prefetch=0,
                grid=(n_par, n_seq),
                in_specs=[
                    pl.BlockSpec((tile_rows, lanes),
                                 lambda c, i, _s=n_seq: (c * _s + i, 0)),
                    pl.BlockSpec((tile_rows, lanes),
                                 lambda c, i, _s=n_seq: (c * _s + i, 0)),
                ],
                out_specs=pl.BlockSpec((None, acc_rows, lanes),
                                       lambda c, i: (c, 0, 0)),
                scratch_shapes=[pltpu.VMEM((acc_rows, lanes), jnp.float32)],
            ),
            compiler_params=pltpu.CompilerParams(
                dimension_semantics=("parallel", "arbitrary")),
        )(x2, t2)
        # Tiny cross-lane reduce of the per-chunk partials + mean, done in XLA.
        # Padded elements contribute exactly 0; divide by the true count.
        return jnp.sum(partials) / jnp.float32(total_n)
    else:
        kernel = functools.partial(
            _focal_map_kernel, alpha=float(alpha), gamma=float(gamma),
            logits=bool(logits))
        out = pl.pallas_call(
            kernel,
            out_shape=jax.ShapeDtypeStruct((rows, lanes), inputs.dtype),
            grid_spec=pltpu.PrefetchScalarGridSpec(
                num_scalar_prefetch=0,
                grid=(num_blocks,),
                in_specs=[
                    pl.BlockSpec((tile_rows, lanes), lambda i: (i, 0)),
                    pl.BlockSpec((tile_rows, lanes), lambda i: (i, 0)),
                ],
                out_specs=pl.BlockSpec((tile_rows, lanes), lambda i: (i, 0)),
            ),
            compiler_params=pltpu.CompilerParams(
                dimension_semantics=("parallel",)),
        )(x2, t2)
        if pad:
            return out.reshape(-1)[:total_n].reshape(orig_shape)
        return out.reshape(orig_shape)


def _reference_focal_loss(inputs, targets, *, alpha=1.0, gamma=2.0,
                          logits=False, reduce=True):
    p = inputs.astype(jnp.float32)
    t = targets.astype(jnp.float32)
    if logits:
        bce = jnp.maximum(p, 0.0) - p * t + jnp.log1p(jnp.exp(-jnp.abs(p)))
    else:
        bce = -(t * jnp.maximum(jnp.log(p), -100.0)
                + (1.0 - t) * jnp.maximum(jnp.log(1.0 - p), -100.0))
    pt = jnp.exp(-bce)
    fl = alpha * (1.0 - pt) ** gamma * bce
    return jnp.mean(fl) if reduce else fl


if __name__ == "__main__":
    key = jax.random.PRNGKey(0)
    k1, k2, k3, k4 = jax.random.split(key, 4)

    # --- small NCHW case: probabilities + binary targets, default config ---
    x = jax.random.uniform(k1, (2, 4, 16, 16), dtype=jnp.float32,
                           minval=1e-3, maxval=1.0 - 1e-3)
    tgt = (jax.random.uniform(k2, (2, 4, 16, 16)) > 0.5).astype(jnp.float32)

    loss = jax.block_until_ready(
        focal_loss(x, tgt, alpha=1.0, gamma=2.0, logits=False, reduce=True))
    ref = _reference_focal_loss(x, tgt)
    assert jnp.allclose(loss, ref, rtol=1e-5, atol=1e-6), (loss, ref)

    # elementwise (reduce=False) path: output keeps the input dtype
    fl_map = jax.block_until_ready(focal_loss(x, tgt, reduce=False))
    ref_map = _reference_focal_loss(x, tgt, reduce=False)
    assert fl_map.shape == x.shape and fl_map.dtype == x.dtype
    assert jnp.allclose(fl_map, ref_map, rtol=1e-5, atol=1e-6)

    # non-integer gamma exercises the pow branch
    loss_g = jax.block_until_ready(focal_loss(x, tgt, alpha=0.25, gamma=1.5))
    ref_g = _reference_focal_loss(x, tgt, alpha=0.25, gamma=1.5)
    assert jnp.allclose(loss_g, ref_g, rtol=1e-5, atol=1e-6), (loss_g, ref_g)

    # --- logits path with native bf16 inputs (no wrapper-side upcast) ---
    xl = jax.random.normal(k3, (2, 4, 16, 16), dtype=jnp.bfloat16)
    tl = (jax.random.uniform(k4, (2, 4, 16, 16)) > 0.5).astype(jnp.bfloat16)
    loss_l = jax.block_until_ready(focal_loss(xl, tl, logits=True))
    ref_l = _reference_focal_loss(xl, tl, logits=True)
    assert jnp.allclose(loss_l, ref_l, rtol=1e-3, atol=1e-4), (loss_l, ref_l)

    # --- awkward shape (not a multiple of 1024): exercises the padded path ---
    xo = jax.random.uniform(k3, (2, 3, 5, 7), dtype=jnp.float32,
                            minval=1e-3, maxval=1.0 - 1e-3)
    to = (jax.random.uniform(k4, (2, 3, 5, 7)) > 0.5).astype(jnp.float32)
    loss_o = jax.block_until_ready(focal_loss(xo, to))
    ref_o = _reference_focal_loss(xo, to)
    assert jnp.allclose(loss_o, ref_o, rtol=1e-5, atol=1e-6), (loss_o, ref_o)
    fl_o = jax.block_until_ready(focal_loss(xo, to, reduce=False))
    assert fl_o.shape == xo.shape
    assert jnp.allclose(fl_o, _reference_focal_loss(xo, to, reduce=False),
                        rtol=1e-5, atol=1e-6)

    # padded path with logits
    xol = jax.random.normal(k1, (3, 5, 7), dtype=jnp.float32)
    tol = (jax.random.uniform(k2, (3, 5, 7)) > 0.5).astype(jnp.float32)
    loss_ol = jax.block_until_ready(focal_loss(xol, tol, logits=True))
    ref_ol = _reference_focal_loss(xol, tol, logits=True)
    assert jnp.allclose(loss_ol, ref_ol, rtol=1e-5, atol=1e-6), (loss_ol, ref_ol)

    # --- larger case: exercises multi-block tiling + 2-way parallel split ---
    xb = jax.random.uniform(k1, (4, 8, 256, 256), dtype=jnp.float32,
                            minval=1e-3, maxval=1.0 - 1e-3)
    tb = (jax.random.uniform(k2, (4, 8, 256, 256)) > 0.5).astype(jnp.float32)
    loss_b = jax.block_until_ready(focal_loss(xb, tb))
    ref_b = _reference_focal_loss(xb, tb)
    assert jnp.allclose(loss_b, ref_b, rtol=1e-4, atol=1e-6), (loss_b, ref_b)

    print("KERNEL_OK")
</pallas_src>

<mosaic_0001>
module attributes {stable_mosaic.version = 11 : i64} {
  func.func @_focal_reduce_kernel(%arg0: i32, %arg1: i32, %arg2: memref<8x256xf32, #tpu.memory_space<vmem>>, %arg3: memref<8x256xf32, #tpu.memory_space<vmem>>, %arg4: memref<1x8x256xf32, #tpu.memory_space<vmem>>, %arg5: memref<8x256xf32, #tpu.memory_space<vmem>>) attributes {dimension_semantics = [#tpu.dimension_semantics<parallel>, #tpu.dimension_semantics<arbitrary>], iteration_bounds = array<i64: 1, 1>, scalar_prefetch = 0 : i64, scratch_operands = 1 : i64, tpu.core_type = #tpu.core_type<tc>, window_params = [{transform_indices = @transform_0, window_bounds = array<i64: 8, 256>}, {transform_indices = @transform_1, window_bounds = array<i64: 8, 256>}, {transform_indices = @transform_2, window_bounds = array<i64: 1, 8, 256>}]} {
    %c0_i32 = arith.constant 0 : i32
    %0 = arith.cmpi eq, %arg1, %c0_i32 : i32
    %1 = arith.extui %0 : i1 to i32
    %c0_i32_0 = arith.constant 0 : i32
    %2 = arith.cmpi ne, %1, %c0_i32_0 : i32
    scf.if %2 {
      %cst_17 = arith.constant 0.000000e+00 : f32
      %35 = vector.broadcast %cst_17 : f32 to vector<8x256xf32>
      %c0_18 = arith.constant 0 : index
      %c0_19 = arith.constant 0 : index
      %36 = vector.load %arg5[%c0_18, %c0_19] : memref<8x256xf32, #tpu.memory_space<vmem>>, vector<8x256xf32>
      tpu.vector_store %arg5[%c0_18, %c0_19], %35 {strides = array<i32>} : memref<8x256xf32, #tpu.memory_space<vmem>>, vector<8x256xf32>,
    } else {
    }
    %c0 = arith.constant 0 : index
    %c0_1 = arith.constant 0 : index
    %3 = vector.load %arg2[%c0, %c0_1] : memref<8x256xf32, #tpu.memory_space<vmem>>, vector<8x256xf32>
    %c0_2 = arith.constant 0 : index
    %c0_3 = arith.constant 0 : index
    %4 = vector.load %arg3[%c0_2, %c0_3] : memref<8x256xf32, #tpu.memory_space<vmem>>, vector<8x256xf32>
    %5 = math.log %3 : vector<8x256xf32>
    %cst = arith.constant -1.000000e+02 : f32
    %6 = vector.broadcast %cst : f32 to vector<8x256xf32>
    %7 = arith.maximumf %5, %6 : vector<8x256xf32>
    %cst_4 = arith.constant 1.000000e+00 : f32
    %8 = vector.broadcast %cst_4 : f32 to vector<8x256xf32>
    %9 = arith.subf %8, %3 : vector<8x256xf32>
    %10 = math.log %9 : vector<8x256xf32>
    %cst_5 = arith.constant -1.000000e+02 : f32
    %11 = vector.broadcast %cst_5 : f32 to vector<8x256xf32>
    %12 = arith.maximumf %10, %11 : vector<8x256xf32>
    %13 = arith.mulf %4, %7 : vector<8x256xf32>
    %cst_6 = arith.constant 1.000000e+00 : f32
    %14 = vector.broadcast %cst_6 : f32 to vector<8x256xf32>
    %15 = arith.subf %14, %4 : vector<8x256xf32>
    %16 = arith.mulf %15, %12 : vector<8x256xf32>
    %17 = arith.addf %13, %16 : vector<8x256xf32>
    %cst_7 = arith.constant 0.000000e+00 : f32
    %18 = vector.broadcast %cst_7 : f32 to vector<8x256xf32>
    %19 = arith.subf %18, %17 : vector<8x256xf32>
    %cst_8 = arith.constant 0.000000e+00 : f32
    %20 = vector.broadcast %cst_8 : f32 to vector<8x256xf32>
    %21 = arith.subf %20, %19 : vector<8x256xf32>
    %22 = math.exp %21 : vector<8x256xf32>
    %cst_9 = arith.constant 1.000000e+00 : f32
    %23 = vector.broadcast %cst_9 : f32 to vector<8x256xf32>
    %24 = arith.subf %23, %22 : vector<8x256xf32>
    %25 = arith.mulf %24, %24 : vector<8x256xf32>
    %cst_10 = arith.constant 1.000000e+00 : f32
    %26 = vector.broadcast %cst_10 : f32 to vector<8x256xf32>
    %27 = arith.mulf %26, %25 : vector<8x256xf32>
    %28 = arith.mulf %27, %19 : vector<8x256xf32>
    %c0_11 = arith.constant 0 : index
    %c0_12 = arith.constant 0 : index
    %29 = vector.load %arg5[%c0_11, %c0_12] : memref<8x256xf32, #tpu.memory_space<vmem>>, vector<8x256xf32>
    %30 = arith.addf %29, %28 : vector<8x256xf32>
    %c0_13 = arith.constant 0 : index
    %c0_14 = arith.constant 0 : index
    %31 = vector.load %arg5[%c0_13, %c0_14] : memref<8x256xf32, #tpu.memory_space<vmem>>, vector<8x256xf32>
    tpu.vector_store %arg5[%c0_13, %c0_14], %30 {strides = array<i32>} : memref<8x256xf32, #tpu.memory_space<vmem>>, vector<8x256xf32>,
    %c0_i32_15 = arith.constant 0 : i32
    %32 = arith.cmpi eq, %arg1, %c0_i32_15 : i32
    %33 = arith.extui %32 : i1 to i32
    %c0_i32_16 = arith.constant 0 : i32
    %34 = arith.cmpi ne, %33, %c0_i32_16 : i32
    scf.if %34 {
      %c0_17 = arith.constant 0 : index
      %c0_18 = arith.constant 0 : index
      %35 = vector.load %arg5[%c0_17, %c0_18] : memref<8x256xf32, #tpu.memory_space<vmem>>, vector<8x256xf32>
      %c0_19 = arith.constant 0 : index
      %c0_20 = arith.constant 0 : index
      %c0_21 = arith.constant 0 : index
      %36 = vector.load %arg4[%c0_19, %c0_20, %c0_21] : memref<1x8x256xf32, #tpu.memory_space<vmem>>, vector<1x8x256xf32>
      %37 = vector.shape_cast %36 : vector<1x8x256xf32> to vector<8x256xf32>
      %38 = vector.shape_cast %35 : vector<8x256xf32> to vector<1x8x256xf32>
      tpu.vector_store %arg4[%c0_19, %c0_20, %c0_21], %38 {strides = array<i32>} : memref<1x8x256xf32, #tpu.memory_space<vmem>>, vector<1x8x256xf32>,
    } else {
    }
    return
  }
  func.func @transform_0(%arg0: i32, %arg1: i32) -> (i32, i32) {
    %c1_i32 = arith.constant 1 : i32
    %0 = arith.muli %arg0, %c1_i32 : i32
    %1 = arith.addi %0, %arg1 : i32
    %c0_i32 = arith.constant 0 : i32
    %c0_i32_0 = arith.constant 0 : i32
    return %1, %c0_i32 : i32, i32
  }
  func.func @transform_1(%arg0: i32, %arg1: i32) -> (i32, i32) {
    %c1_i32 = arith.constant 1 : i32
    %0 = arith.muli %arg0, %c1_i32 : i32
    %1 = arith.addi %0, %arg1 : i32
    %c0_i32 = arith.constant 0 : i32
    %c0_i32_0 = arith.constant 0 : i32
    return %1, %c0_i32 : i32, i32
  }
  func.func @transform_2(%arg0: i32, %arg1: i32) -> (i32, i32, i32) {
    %c0_i32 = arith.constant 0 : i32
    %c0_i32_0 = arith.constant 0 : i32
    %c0_i32_1 = arith.constant 0 : i32
    return %arg0, %c0_i32, %c0_i32_0 : i32, i32, i32
  }
}

</mosaic_0001>

<llo_original>
// kernel: tpu_custom_call.1
$region0: #{tpu_custom_call.1}
  #allocation0 [shape = 'u32[]', space=smem, size = 0x4, offset = 0x4, fixed_abs, tag = 'smem constant byte address 0x4 - core index']
  #allocation1 [shape = 'u32[144,128]{1,0:T(1,128)}', space=vmem, size = 0x12000, scoped, tag = 'internal scratch']
  #allocation2 [shape = 'f32[8,256]{1,0:T(8,128)}', space=vmem, size = 0x2000, scoped, tag = 'scratch operand']
  %s0 = inlined_call_operand.hbm [shape: f32[8,256], index: 0, kind: input, shape index: {}]
  %s1 = inlined_call_operand.hbm [shape: f32[8,256], index: 1, kind: input, shape index: {}]
  %s2 = inlined_call_operand.hbm [shape: f32[1,8,256], index: 2, kind: output, shape index: {}]
  %s3 = sld [smem:[#allocation0]]
  $region34: #{tpu_custom_call.1} parent=0
    _
  %s5 = ssub.s32 1, %s3
  %s6 = scalar_select 0, %s5, %s3
  $region1: #{tpu_custom_call.1} parent=0
    #allocation3 [shape = 'u8[8192]{0}', space=vmem, size = 0x2000, scoped, tag = 'input window, operand 0, single buffered']
    #allocation4 [shape = 's32[1]{0}', space=sflag, size = 0x4, scoped, tag = 'scoped memory for tpu_custom_call.1']
    #allocation5 [shape = 's32[1]{0}', space=sflag, size = 0x4, scoped, tag = 'scoped memory for tpu_custom_call.1']
    #allocation6 [shape = 'u8[8192]{0}', space=vmem, size = 0x2000, scoped, tag = 'input window, operand 1, single buffered']
    #allocation7 [shape = 's32[1]{0}', space=sflag, size = 0x4, scoped, tag = 'scoped memory for tpu_custom_call.1']
    #allocation8 [shape = 'u8[8192]{0}', space=vmem, size = 0x2000, scoped, tag = 'output window, operand 0, single buffered']
    %7 = vsyncpa [#allocation4], 0
    %8 = vsyncpa [#allocation7], 0
    %9 = vsyncpa [#allocation5], 0
    // Predicated region
    $region2: #{tpu_custom_call.1} parent=1 // pred_check
      _
    $region3: #{tpu_custom_call.1} parent=1 // pred_check_branch
      %11 = sbr.rel (0) target = $region5
    $region4: #{tpu_custom_call.1} parent=1 // pred_region
      %s12 = sadd.s32 0, 0
      %s14 = ssub.s32 256, 256
      %15 = vsyncadd [#allocation4], %s14
      %s16 = smul.addr %s12, 2
      %s17 = smul.addr %s16, 128
      %s18 = scalar_lea.hbm %s0, %s17
      %s20 = sshll.u32 [#allocation3], 4
      %s21 = int_to_ptr.vmem [resolvable:$true] %s20
      %23 = dma.hbm_to_vmem [thread:$0]  %s18, 256, %s21, [#allocation4]
    $region5: #{tpu_custom_call.1} parent=1 // pred_fallthru
      _
    // Predicated region
    $region6: #{tpu_custom_call.1} parent=1 // pred_check
      _
    $region7: #{tpu_custom_call.1} parent=1 // pred_check_branch
      %25 = sbr.rel (0) target = $region9
    $region8: #{tpu_custom_call.1} parent=1 // pred_region
      %s26 = sadd.s32 0, 0
      %s28 = ssub.s32 256, 256
      %29 = vsyncadd [#allocation7], %s28
      %s30 = smul.addr %s26, 2
      %s31 = smul.addr %s30, 128
      %s32 = scalar_lea.hbm %s1, %s31
      %s34 = sshll.u32 [#allocation6], 4
      %s35 = int_to_ptr.vmem [resolvable:$true] %s34
      %37 = dma.hbm_to_vmem [thread:$0]  %s32, 256, %s35, [#allocation7]
    $region9: #{tpu_custom_call.1} parent=1 // pred_fallthru
      _
    // Predicated region
    $region10: #{tpu_custom_call.1} parent=1 // pred_check
      _
    $region11: #{tpu_custom_call.1} parent=1 // pred_check_branch
      %39 = sbr.rel (0) target = $region13
    $region12: #{tpu_custom_call.1} parent=1 // pred_region
      %40 = dma.done [#allocation4], 256
    $region13: #{tpu_custom_call.1} parent=1 // pred_fallthru
      _
    // Predicated region
    $region14: #{tpu_custom_call.1} parent=1 // pred_check
      _
    $region15: #{tpu_custom_call.1} parent=1 // pred_check_branch
      %42 = sbr.rel (0) target = $region17
    $region16: #{tpu_custom_call.1} parent=1 // pred_region
      %43 = dma.done [#allocation7], 256
    $region17: #{tpu_custom_call.1} parent=1 // pred_fallthru
      _
    %s44 = sadd.s32 0, 0
    %s45 = sadd.s32 0, 0
    %p46 = scmp.eq.s32.totalorder 0, 0
    // Predicated region
    $region18: #{tpu_custom_call.1} parent=1 // pred_check
      %p47 = pneg %p46
    $region19: #{tpu_custom_call.1} parent=1 // pred_check_branch
      %49 = sbr.rel (%p47) target = $region21
    $region20: #{tpu_custom_call.1} parent=1 // pred_region
      %50 = vst [vmem:[#allocation2] sm:$0xff] 0.0
      %51 = vst [vmem:[#allocation2 + $0x8] sm:$0xff] 0.0
    $region21: #{tpu_custom_call.1} parent=1 // pred_fallthru
      _
    %v52 = vld [vmem:[#allocation3] sm:$0xff]
    %v53 = vld [vmem:[#allocation3 + $0x8] sm:$0xff]
    %v54 = vld [vmem:[#allocation6] sm:$0xff]
    %v55 = vld [vmem:[#allocation6 + $0x8] sm:$0xff]
    %v56 = vlog2.pop %v52
    %v57 = vmul.f32 %v56, 0.6931472
    %v58 = vlog2.pop %v53
    %v59 = vmul.f32 %v58, 0.6931472
    %v60 = vmax.f32 %v57, -100.0
    %v61 = vmax.f32 %v59, -100.0
    %v62 = vsub.f32 1.0, %v52
    %v63 = vsub.f32 1.0, %v53
    %v64 = vlog2.pop %v62
    %v65 = vmul.f32 %v64, 0.6931472
    %v66 = vlog2.pop %v63
    %v67 = vmul.f32 %v66, 0.6931472
    %v68 = vmax.f32 %v65, -100.0
    %v69 = vmax.f32 %v67, -100.0
    %v70 = vmul.f32 %v54, %v60
    %v71 = vmul.f32 %v55, %v61
    %v72 = vsub.f32 1.0, %v54
    %v73 = vsub.f32 1.0, %v55
    %v74 = vmul.f32 %v72, %v68
    %v75 = vmul.f32 %v73, %v69
    %v76 = vadd.f32 %v70, %v74
    %v77 = vadd.f32 %v71, %v75
    %v78 = vsub.f32 0.0, %v76
    %v79 = vsub.f32 0.0, %v77
    %v80 = vsub.f32 0.0, %v78
    %v81 = vsub.f32 0.0, %v79
    %v82 = vmul.f32 %v80, 1.442695
    %v83 = vpow.pop %v82
    %v84 = vmul.f32 %v81, 1.442695
    %v85 = vpow.pop %v84
    %v86 = vsub.f32 1.0, %v83
    %v87 = vsub.f32 1.0, %v85
    %v88 = vmul.f32 %v86, %v86
    %v89 = vmul.f32 %v87, %v87
    %v90 = vmul.f32 %v88, %v78
    %v91 = vmul.f32 %v89, %v79
    %v92 = vld [vmem:[#allocation2] sm:$0xff]
    %v93 = vld [vmem:[#allocation2 + $0x8] sm:$0xff]
    %v94 = vadd.f32 %v92, %v90
    %v95 = vadd.f32 %v93, %v91
    %96 = vst [vmem:[#allocation2] sm:$0xff] %v94
    %97 = vst [vmem:[#allocation2 + $0x8] sm:$0xff] %v95
    // Predicated region
    $region22: #{tpu_custom_call.1} parent=1 // pred_check
      %p98 = pneg %p46
    $region23: #{tpu_custom_call.1} parent=1 // pred_check_branch
      %100 = sbr.rel (%p98) target = $region25
    $region24: #{tpu_custom_call.1} parent=1 // pred_region
      %v101 = vld [vmem:[#allocation2] sm:$0xff]
      %v102 = vld [vmem:[#allocation2 + $0x8] sm:$0xff]
      %103 = vst [vmem:[#allocation8] sm:$0xff] %v101
      %104 = vst [vmem:[#allocation8 + $0x8] sm:$0xff] %v102
    $region25: #{tpu_custom_call.1} parent=1 // pred_fallthru
      _
    // Predicated region
    $region26: #{tpu_custom_call.1} parent=1 // pred_check
      _
    $region27: #{tpu_custom_call.1} parent=1 // pred_check_branch
      %106 = sbr.rel (0) target = $region29
    $region28: #{tpu_custom_call.1} parent=1 // pred_region
      %s108 = ssub.s32 256, 256
      %109 = vsyncadd [#allocation5], %s108
      %s111 = sshll.u32 [#allocation8], 4
      %s112 = int_to_ptr.vmem [resolvable:$true] %s111
      %114 = dma.vmem_to_hbm [thread:$0]  %s112, 256, %s2, [#allocation5]
    $region29: #{tpu_custom_call.1} parent=1 // pred_fallthru
      _
    // Predicated region
    $region30: #{tpu_custom_call.1} parent=1 // pred_check
      _
    $region31: #{tpu_custom_call.1} parent=1 // pred_check_branch
      %116 = sbr.rel (0) target = $region33
    $region32: #{tpu_custom_call.1} parent=1 // pred_region
      %117 = dma.done [#allocation5], 256
    $region33: #{tpu_custom_call.1} parent=1 // pred_fallthru
      _
    %118 = vsyncpa [#allocation4], 1
    %119 = vsyncpa [#allocation7], 1
    %120 = vsyncpa [#allocation5], 1

</llo_original>
